<compile_context>
chip_gen: v7x
topology: tpu7x:2x2x1
jax: 0.10.0
libtpu: 0.0.40
codegen_flags: <defaults>
</compile_context>

<pallas_src>
import jax
import jax.numpy as jnp
from jax.experimental import pallas as pl
from jax.experimental.pallas import tpu as pltpu

HIDDEN = 128
LANE = 128


def _round_up(x, m):
    return ((x + m - 1) // m) * m


def _pad2(a, rows, cols):
    pr, pc = rows - a.shape[0], cols - a.shape[1]
    if pr == 0 and pc == 0:
        return a
    return jnp.pad(a, ((0, pr), (0, pc)))


def _mlp_kernel(x_ref, w1_ref, b1_ref, w2_ref, b2_ref, w3_ref, b3_ref, o_ref):
    cdt = w1_ref.dtype                      # matmul operand dtype (bf16 or f32)
    out_dim = o_ref.shape[-1]

    x = x_ref[...]                          # (TB, in_dim), already in compute dtype
    # layer 1 + ReLU  (f32 accumulate, f32 elementwise)
    h1 = jnp.dot(x, w1_ref[...], preferred_element_type=jnp.float32)
    h1 = jnp.maximum(h1 + b1_ref[...], 0.0)                       # (TB, 128) f32
    # layer 2 + ReLU
    h2 = jnp.dot(h1.astype(cdt), w2_ref[...], preferred_element_type=jnp.float32)
    h2 = jnp.maximum(h2 + b2_ref[...], 0.0)                       # (TB, 128) f32
    # layer 3 (no activation); w3 is lane-padded for a uniform MXU N, accumulator is
    # sliced back to out_dim before the store so only out_dim lanes hit HBM.
    out = jnp.dot(h2.astype(cdt), w3_ref[...], preferred_element_type=jnp.float32)
    o_ref[...] = (out[:, :out_dim] + b3_ref[...]).astype(o_ref.dtype)


def feedforward_nn(obs, params, *, block_b=2048, use_bf16=True):
    """Pallas forward pass.  obs: (B, in_dim) float32.  Returns (B, out_dim) float32."""
    w1, b1, w2, b2, w3, b3 = params
    obs = jnp.asarray(obs, jnp.float32)
    B, in_dim = obs.shape
    out_dim = w3.shape[1]

    cdt = jnp.bfloat16 if use_bf16 else jnp.float32
    obs_bytes = 2 if use_bf16 else 4
    out_mxu = _round_up(out_dim, LANE)          # uniform MXU N; sliced in-kernel

    # ---- batch tiling --------------------------------------------------------
    # Per-row VMEM: double-buffered obs tile + double-buffered f32 out tile +
    # the f32/bf16 128-wide intermediates materialized inside the body.
    bytes_per_row = (2 * obs_bytes * in_dim          # obs tile x2 buffers
                     + 2 * 4 * out_dim               # out tile x2 buffers
                     + (3 * 4 + 2 * 2) * HIDDEN)     # h1/h2/out f32 + h1/h2 bf16
    vmem_budget = 12 * 1024 * 1024                   # headroom vs v5e 16 MiB scoped
    tb_cap = max(16, (vmem_budget // bytes_per_row) // 16 * 16)
    tb_max = max(16, min(_round_up(block_b, 16), tb_cap))

    n_steps = pl.cdiv(B, tb_max)
    if n_steps == 1 and B >= 1024:
        n_steps = 2                                  # keep both v7x TCs busy
    tb = _round_up(pl.cdiv(B, n_steps), 16)          # padding bounded by 16*n_steps rows
    b_pad = n_steps * tb

    # ---- operand prep (bf16 cast fused with the batch pad) -------------------
    obs_p = obs.astype(cdt)
    if b_pad != B:
        obs_p = jnp.pad(obs_p, ((0, b_pad - B), (0, 0)))
    w1_p = w1.astype(cdt)                                    # (in_dim, 128)
    w2_p = w2.astype(cdt)                                    # (128, 128)
    w3_p = _pad2(w3, HIDDEN, out_mxu).astype(cdt)            # zero-padded extra cols
    b1_p = b1.astype(jnp.float32)                            # (1, 128)
    b2_p = b2.astype(jnp.float32)                            # (1, 128)
    b3_p = b3.astype(jnp.float32)                            # (1, out_dim), unpadded

    flops = 2 * b_pad * (in_dim * HIDDEN + HIDDEN * HIDDEN + HIDDEN * out_mxu)
    bytes_accessed = (b_pad * in_dim * obs_bytes + b_pad * out_dim * 4
                      + (in_dim + HIDDEN + out_mxu) * HIDDEN * obs_bytes
                      + (2 * HIDDEN + out_dim) * 4)
    cost = pl.CostEstimate(flops=flops, transcendentals=0,
                           bytes_accessed=bytes_accessed)

    # Weights/biases: constant index_map => VMEM-resident, DMA'd only on step 0.
    resident = lambda shp: pl.BlockSpec(shp, lambda i: (0, 0))

    out_padded = pl.pallas_call(
        _mlp_kernel,
        out_shape=jax.ShapeDtypeStruct((b_pad, out_dim), jnp.float32),
        grid=(n_steps,),
        in_specs=[
            pl.BlockSpec((tb, in_dim), lambda i: (i, 0)),    # obs tile (pipelined)
            resident((in_dim, HIDDEN)),                      # w1
            resident((1, HIDDEN)),                           # b1
            resident((HIDDEN, HIDDEN)),                      # w2
            resident((1, HIDDEN)),                           # b2
            resident((HIDDEN, out_mxu)),                     # w3 (lane-padded cols)
            resident((1, out_dim)),                          # b3
        ],
        out_specs=pl.BlockSpec((tb, out_dim), lambda i: (i, 0)),
        compiler_params=pltpu.CompilerParams(
            dimension_semantics=("parallel",),
        ),
        cost_estimate=cost,
    )(obs_p, w1_p, b1_p, w2_p, b2_p, w3_p, b3_p)

    return out_padded[:B]


def init_params(key, in_dim, out_dim):
    """Deterministic init mimicking nn.Linear's U(-1/sqrt(fan_in), 1/sqrt(fan_in)).
    Weights are stored as (fan_in, fan_out) — i.e. already transposed."""
    ks = jax.random.split(key, 6)

    def lin(kw, kb, fan_in, fan_out):
        bound = 1.0 / jnp.sqrt(jnp.float32(fan_in))
        w = jax.random.uniform(kw, (fan_in, fan_out), jnp.float32, -bound, bound)
        b = jax.random.uniform(kb, (1, fan_out), jnp.float32, -bound, bound)
        return w, b

    w1, b1 = lin(ks[0], ks[1], in_dim, HIDDEN)
    w2, b2 = lin(ks[2], ks[3], HIDDEN, HIDDEN)
    w3, b3 = lin(ks[4], ks[5], HIDDEN, out_dim)
    return (w1, b1, w2, b2, w3, b3)


def reference_forward(obs, params, compute_dtype=jnp.float32):
    """Pure-JAX reference; compute_dtype lets us match the kernel's bf16 operands."""
    w1, b1, w2, b2, w3, b3 = params
    c = compute_dtype
    h1 = jnp.dot(obs.astype(c), w1.astype(c), preferred_element_type=jnp.float32) + b1
    h1 = jnp.maximum(h1, 0.0)
    h2 = jnp.dot(h1.astype(c), w2.astype(c), preferred_element_type=jnp.float32) + b2
    h2 = jnp.maximum(h2, 0.0)
    return jnp.dot(h2.astype(c), w3.astype(c), preferred_element_type=jnp.float32) + b3


if __name__ == "__main__":
    key = jax.random.PRNGKey(0)
    k_obs, k_params = jax.random.split(key)

    B, in_dim, out_dim = 8, 16, 4          # small shapes consistent with the module
    obs = jax.random.normal(k_obs, (B, in_dim), jnp.float32)
    params = init_params(k_params, in_dim, out_dim)

    out = feedforward_nn(obs, params)
    out = jax.block_until_ready(out)
    assert out.shape == (B, out_dim)

    # Tight check against a reference using identical bf16-operand / f32-accumulate math.
    ref_bf16 = reference_forward(obs, params, compute_dtype=jnp.bfloat16)
    assert jnp.allclose(out, ref_bf16, atol=1e-4, rtol=1e-4), "mismatch vs matched reference"

    # Loose sanity check against the exact f32 PyTorch semantics.
    ref_f32 = reference_forward(obs, params, compute_dtype=jnp.float32)
    assert jnp.allclose(out, ref_f32, atol=1e-1, rtol=1e-1), "mismatch vs f32 reference"

    # Multi-step-grid coverage (exercises the big-tile / bounded-batch-pad path).
    B2 = 3000
    obs2 = jax.random.normal(k_obs, (B2, in_dim), jnp.float32)
    out2 = jax.block_until_ready(feedforward_nn(obs2, params))
    assert out2.shape == (B2, out_dim)
    ref2 = reference_forward(obs2, params, compute_dtype=jnp.bfloat16)
    assert jnp.allclose(out2, ref2, atol=2e-4, rtol=2e-4), "mismatch on multi-step grid"

    print("KERNEL_OK")
</pallas_src>

<mosaic_0001>
module attributes {stable_mosaic.version = 11 : i64} {
  func.func @_mlp_kernel(%arg0: i32, %arg1: memref<16x16xbf16, #tpu.memory_space<vmem>>, %arg2: memref<16x128xbf16, #tpu.memory_space<vmem>>, %arg3: memref<1x128xf32, #tpu.memory_space<vmem>>, %arg4: memref<128x128xbf16, #tpu.memory_space<vmem>>, %arg5: memref<1x128xf32, #tpu.memory_space<vmem>>, %arg6: memref<128x128xbf16, #tpu.memory_space<vmem>>, %arg7: memref<1x4xf32, #tpu.memory_space<vmem>>, %arg8: memref<16x4xf32, #tpu.memory_space<vmem>>) attributes {dimension_semantics = [#tpu.dimension_semantics<parallel>], iteration_bounds = array<i64: 1>, scalar_prefetch = 0 : i64, scratch_operands = 0 : i64, tpu.core_type = #tpu.core_type<tc>, window_params = [{transform_indices = @transform_0, window_bounds = array<i64: 16, 16>}, {pipeline_mode = #tpu.pipeline_mode<synchronous>, transform_indices = @transform_1, window_bounds = array<i64: 16, 128>}, {pipeline_mode = #tpu.pipeline_mode<synchronous>, transform_indices = @transform_2, window_bounds = array<i64: 1, 128>}, {pipeline_mode = #tpu.pipeline_mode<synchronous>, transform_indices = @transform_3, window_bounds = array<i64: 128, 128>}, {pipeline_mode = #tpu.pipeline_mode<synchronous>, transform_indices = @transform_4, window_bounds = array<i64: 1, 128>}, {pipeline_mode = #tpu.pipeline_mode<synchronous>, transform_indices = @transform_5, window_bounds = array<i64: 128, 128>}, {pipeline_mode = #tpu.pipeline_mode<synchronous>, transform_indices = @transform_6, window_bounds = array<i64: 1, 4>}, {transform_indices = @transform_7, window_bounds = array<i64: 16, 4>}]} {
    %c0 = arith.constant 0 : index
    %c0_0 = arith.constant 0 : index
    %0 = vector.load %arg1[%c0, %c0_0] : memref<16x16xbf16, #tpu.memory_space<vmem>>, vector<16x16xbf16>
    %c0_1 = arith.constant 0 : index
    %c0_2 = arith.constant 0 : index
    %1 = vector.load %arg2[%c0_1, %c0_2] : memref<16x128xbf16, #tpu.memory_space<vmem>>, vector<16x128xbf16>
    %cst = arith.constant dense<0.000000e+00> : vector<16x128xf32>
    %2 = tpu.matmul %0, %1, %cst {dimension_numbers = #tpu.dot_dimension_numbers<[1], [0], [0], [1], [0, 0, 1, 1], [], []>} : vector<16x16xbf16>, vector<16x128xbf16>, vector<16x128xf32> -> vector<16x128xf32>
    %c0_3 = arith.constant 0 : index
    %c0_4 = arith.constant 0 : index
    %3 = vector.load %arg3[%c0_3, %c0_4] : memref<1x128xf32, #tpu.memory_space<vmem>>, vector<1x128xf32>
    %4 = vector.broadcast %3 : vector<1x128xf32> to vector<16x128xf32>
    %5 = arith.addf %2, %4 : vector<16x128xf32>
    %cst_5 = arith.constant 0.000000e+00 : f32
    %6 = vector.broadcast %cst_5 : f32 to vector<16x128xf32>
    %7 = arith.maximumf %5, %6 : vector<16x128xf32>
    %8 = arith.truncf %7 : vector<16x128xf32> to vector<16x128xbf16>
    %c0_6 = arith.constant 0 : index
    %c0_7 = arith.constant 0 : index
    %9 = vector.load %arg4[%c0_6, %c0_7] : memref<128x128xbf16, #tpu.memory_space<vmem>>, vector<128x128xbf16>
    %cst_8 = arith.constant dense<0.000000e+00> : vector<16x128xf32>
    %10 = tpu.matmul %8, %9, %cst_8 {dimension_numbers = #tpu.dot_dimension_numbers<[1], [0], [0], [1], [0, 0, 1, 1], [], []>} : vector<16x128xbf16>, vector<128x128xbf16>, vector<16x128xf32> -> vector<16x128xf32>
    %c0_9 = arith.constant 0 : index
    %c0_10 = arith.constant 0 : index
    %11 = vector.load %arg5[%c0_9, %c0_10] : memref<1x128xf32, #tpu.memory_space<vmem>>, vector<1x128xf32>
    %12 = vector.broadcast %11 : vector<1x128xf32> to vector<16x128xf32>
    %13 = arith.addf %10, %12 : vector<16x128xf32>
    %cst_11 = arith.constant 0.000000e+00 : f32
    %14 = vector.broadcast %cst_11 : f32 to vector<16x128xf32>
    %15 = arith.maximumf %13, %14 : vector<16x128xf32>
    %16 = arith.truncf %15 : vector<16x128xf32> to vector<16x128xbf16>
    %c0_12 = arith.constant 0 : index
    %c0_13 = arith.constant 0 : index
    %17 = vector.load %arg6[%c0_12, %c0_13] : memref<128x128xbf16, #tpu.memory_space<vmem>>, vector<128x128xbf16>
    %cst_14 = arith.constant dense<0.000000e+00> : vector<16x128xf32>
    %18 = tpu.matmul %16, %17, %cst_14 {dimension_numbers = #tpu.dot_dimension_numbers<[1], [0], [0], [1], [0, 0, 1, 1], [], []>} : vector<16x128xbf16>, vector<128x128xbf16>, vector<16x128xf32> -> vector<16x128xf32>
    %19 = vector.extract_strided_slice %18 {offsets = [0, 0], sizes = [16, 4], strides = [1, 1]} : vector<16x128xf32> to vector<16x4xf32>
    %c0_15 = arith.constant 0 : index
    %c0_16 = arith.constant 0 : index
    %20 = vector.load %arg7[%c0_15, %c0_16] : memref<1x4xf32, #tpu.memory_space<vmem>>, vector<1x4xf32>
    %21 = vector.broadcast %20 : vector<1x4xf32> to vector<16x4xf32>
    %22 = arith.addf %19, %21 : vector<16x4xf32>
    %c0_17 = arith.constant 0 : index
    %c0_18 = arith.constant 0 : index
    %23 = vector.load %arg8[%c0_17, %c0_18] : memref<16x4xf32, #tpu.memory_space<vmem>>, vector<16x4xf32>
    tpu.vector_store %arg8[%c0_17, %c0_18], %22 {strides = array<i32>} : memref<16x4xf32, #tpu.memory_space<vmem>>, vector<16x4xf32>,
    return
  }
  func.func @transform_0(%arg0: i32) -> (i32, i32) {
    %c0_i32 = arith.constant 0 : i32
    %c0_i32_0 = arith.constant 0 : i32
    return %arg0, %c0_i32 : i32, i32
  }
  func.func @transform_1(%arg0: i32) -> (i32, i32) {
    %c0_i32 = arith.constant 0 : i32
    %c0_i32_0 = arith.constant 0 : i32
    %c0_i32_1 = arith.constant 0 : i32
    return %c0_i32, %c0_i32_0 : i32, i32
  }
  func.func @transform_2(%arg0: i32) -> (i32, i32) {
    %c0_i32 = arith.constant 0 : i32
    %c0_i32_0 = arith.constant 0 : i32
    %c0_i32_1 = arith.constant 0 : i32
    return %c0_i32, %c0_i32_0 : i32, i32
  }
  func.func @transform_3(%arg0: i32) -> (i32, i32) {
    %c0_i32 = arith.constant 0 : i32
    %c0_i32_0 = arith.constant 0 : i32
    %c0_i32_1 = arith.constant 0 : i32
    return %c0_i32, %c0_i32_0 : i32, i32
  }
  func.func @transform_4(%arg0: i32) -> (i32, i32) {
    %c0_i32 = arith.constant 0 : i32
    %c0_i32_0 = arith.constant 0 : i32
    %c0_i32_1 = arith.constant 0 : i32
    return %c0_i32, %c0_i32_0 : i32, i32
  }
  func.func @transform_5(%arg0: i32) -> (i32, i32) {
    %c0_i32 = arith.constant 0 : i32
    %c0_i32_0 = arith.constant 0 : i32
    %c0_i32_1 = arith.constant 0 : i32
    return %c0_i32, %c0_i32_0 : i32, i32
  }
  func.func @transform_6(%arg0: i32) -> (i32, i32) {
    %c0_i32 = arith.constant 0 : i32
    %c0_i32_0 = arith.constant 0 : i32
    %c0_i32_1 = arith.constant 0 : i32
    return %c0_i32, %c0_i32_0 : i32, i32
  }
  func.func @transform_7(%arg0: i32) -> (i32, i32) {
    %c0_i32 = arith.constant 0 : i32
    %c0_i32_0 = arith.constant 0 : i32
    return %arg0, %c0_i32 : i32, i32
  }
}

</mosaic_0001>

<llo_original>
// kernel: tpu_custom_call.1
$region0: #{tpu_custom_call.1}
  #allocation0 [shape = 'u32[]', space=smem, size = 0x4, offset = 0x4, fixed_abs, tag = 'smem constant byte address 0x4 - core index']
  #allocation1 [shape = 'u32[144,128]{1,0:T(1,128)}', space=vmem, size = 0x12000, scoped, tag = 'internal scratch']
  %s0 = inlined_call_operand.hbm [shape: bf16[16,16], index: 0, kind: input, shape index: {}]
  %s1 = inlined_call_operand.hbm [shape: bf16[16,128], index: 1, kind: input, shape index: {}]
  %s2 = inlined_call_operand.vmem [shape: f32[1,128], index: 2, kind: input, shape index: {}]
  %s3 = inlined_call_operand.hbm [shape: bf16[128,128], index: 3, kind: input, shape index: {}]
  %s4 = inlined_call_operand.vmem [shape: f32[1,128], index: 4, kind: input, shape index: {}]
  %s5 = inlined_call_operand.hbm [shape: bf16[128,128], index: 5, kind: input, shape index: {}]
  %s6 = inlined_call_operand.vmem [shape: f32[1,4], index: 6, kind: input, shape index: {}]
  %s7 = inlined_call_operand.vmem [shape: f32[16,4], index: 7, kind: output, shape index: {}]
  %s8 = sld [smem:[#allocation0]]
  $region54: #{tpu_custom_call.1} parent=0
    _
  %s10 = ssub.s32 1, %s8
  %s11 = scalar_select 0, %s10, %s8
  $region1: #{tpu_custom_call.1} parent=0
    #allocation2 [shape = 'u8[4096]{0}', space=vmem, size = 0x1000, scoped, tag = 'input window, operand 0, single buffered']
    #allocation3 [shape = 's32[1]{0}', space=sflag, size = 0x4, scoped, tag = 'scoped memory for tpu_custom_call.1']
    #allocation4 [shape = 'u8[4096]{0}', space=vmem, size = 0x1000, scoped, tag = 'input window, operand 1, single buffered']
    #allocation5 [shape = 's32[1]{0}', space=sflag, size = 0x4, scoped, tag = 'scoped memory for tpu_custom_call.1']
    #allocation6 [shape = 'u8[32768]{0}', space=vmem, size = 0x8000, scoped, tag = 'input window, operand 3, single buffered']
    #allocation7 [shape = 'u8[32768]{0}', space=vmem, size = 0x8000, scoped, tag = 'input window, operand 5, single buffered']
    #allocation8 [shape = 's32[1]{0}', space=sflag, size = 0x4, scoped, tag = 'scoped memory for tpu_custom_call.1']
    %12 = vsyncpa [#allocation3], 0
    %13 = vsyncpa [#allocation5], 0
    %14 = vsyncpa [#allocation8], 0
    // Predicated region
    $region2: #{tpu_custom_call.1} parent=1 // pred_check
      _
    $region3: #{tpu_custom_call.1} parent=1 // pred_check_branch
      %16 = sbr.rel (0) target = $region5
    $region4: #{tpu_custom_call.1} parent=1 // pred_region
      %s18 = ssub.s32 128, 128
      %19 = vsyncadd [#allocation3], %s18
      %s20 = sshll.u32 [#allocation2], 4
      %s21 = int_to_ptr.vmem [resolvable:$true] %s20
      %26 = dma.hbm_to_vmem [thread:$0]  %s0, 128, %s21, [#allocation3], 64, 64, 4
    $region5: #{tpu_custom_call.1} parent=1 // pred_fallthru
      _
    // Predicated region
    $region6: #{tpu_custom_call.1} parent=1 // pred_check
      _
    $region7: #{tpu_custom_call.1} parent=1 // pred_check_branch
      %28 = sbr.rel (0) target = $region9
    $region8: #{tpu_custom_call.1} parent=1 // pred_region
      %s30 = ssub.s32 128, 128
      %31 = vsyncadd [#allocation5], %s30
      %s32 = sshll.u32 [#allocation4], 4
      %s33 = int_to_ptr.vmem [resolvable:$true] %s32
      %38 = dma.hbm_to_vmem [thread:$0]  %s1, 128, %s33, [#allocation5], 64, 64, 4
    $region9: #{tpu_custom_call.1} parent=1 // pred_fallthru
      _
    // Predicated region
    $region10: #{tpu_custom_call.1} parent=1 // pred_check
      _
    $region11: #{tpu_custom_call.1} parent=1 // pred_check_branch
      %40 = sbr.rel (0) target = $region13
    $region12: #{tpu_custom_call.1} parent=1 // pred_region
      _
    $region13: #{tpu_custom_call.1} parent=1 // pred_fallthru
      _
    // Predicated region
    $region14: #{tpu_custom_call.1} parent=1 // pred_check
      _
    $region15: #{tpu_custom_call.1} parent=1 // pred_check_branch
      %42 = sbr.rel (0) target = $region17
    $region16: #{tpu_custom_call.1} parent=1 // pred_region
      %s44 = ssub.s32 1024, 1024
      %45 = vsyncadd [#allocation5], %s44
      %s46 = sshll.u32 [#allocation6], 4
      %s47 = int_to_ptr.vmem [resolvable:$true] %s46
      %52 = dma.hbm_to_vmem [thread:$0]  %s3, 1024, %s47, [#allocation5], 64, 64, 4
    $region17: #{tpu_custom_call.1} parent=1 // pred_fallthru
      _
    // Predicated region
    $region18: #{tpu_custom_call.1} parent=1 // pred_check
      _
    $region19: #{tpu_custom_call.1} parent=1 // pred_check_branch
      %54 = sbr.rel (0) target = $region21
    $region20: #{tpu_custom_call.1} parent=1 // pred_region
      _
    $region21: #{tpu_custom_call.1} parent=1 // pred_fallthru
      _
    // Predicated region
    $region22: #{tpu_custom_call.1} parent=1 // pred_check
      _
    $region23: #{tpu_custom_call.1} parent=1 // pred_check_branch
      %56 = sbr.rel (0) target = $region25
    $region24: #{tpu_custom_call.1} parent=1 // pred_region
      %s58 = ssub.s32 1024, 1024
      %59 = vsyncadd [#allocation8], %s58
      %s60 = sshll.u32 [#allocation7], 4
      %s61 = int_to_ptr.vmem [resolvable:$true] %s60
      %66 = dma.hbm_to_vmem [thread:$0]  %s5, 1024, %s61, [#allocation8], 64, 64, 4
    $region25: #{tpu_custom_call.1} parent=1 // pred_fallthru
      _
    // Predicated region
    $region26: #{tpu_custom_call.1} parent=1 // pred_check
      _
    $region27: #{tpu_custom_call.1} parent=1 // pred_check_branch
      %68 = sbr.rel (0) target = $region29
    $region28: #{tpu_custom_call.1} parent=1 // pred_region
      _
    $region29: #{tpu_custom_call.1} parent=1 // pred_fallthru
      _
    // Predicated region
    $region30: #{tpu_custom_call.1} parent=1 // pred_check
      _
    $region31: #{tpu_custom_call.1} parent=1 // pred_check_branch
      %70 = sbr.rel (0) target = $region33
    $region32: #{tpu_custom_call.1} parent=1 // pred_region
      %71 = dma.done [#allocation3], 128
    $region33: #{tpu_custom_call.1} parent=1 // pred_fallthru
      _
    // Predicated region
    $region34: #{tpu_custom_call.1} parent=1 // pred_check
      _
    $region35: #{tpu_custom_call.1} parent=1 // pred_check_branch
      %73 = sbr.rel (0) target = $region37
    $region36: #{tpu_custom_call.1} parent=1 // pred_region
      %74 = dma.done [#allocation5], 128
    $region37: #{tpu_custom_call.1} parent=1 // pred_fallthru
      _
    // Predicated region
    $region38: #{tpu_custom_call.1} parent=1 // pred_check
      _
    $region39: #{tpu_custom_call.1} parent=1 // pred_check_branch
      %76 = sbr.rel (0) target = $region41
    $region40: #{tpu_custom_call.1} parent=1 // pred_region
      %77 = dma.done [#allocation5], 1024
    $region41: #{tpu_custom_call.1} parent=1 // pred_fallthru
      _
    // Predicated region
    $region42: #{tpu_custom_call.1} parent=1 // pred_check
      _
    $region43: #{tpu_custom_call.1} parent=1 // pred_check_branch
      %79 = sbr.rel (0) target = $region45
    $region44: #{tpu_custom_call.1} parent=1 // pred_region
      %80 = dma.done [#allocation8], 1024
    $region45: #{tpu_custom_call.1} parent=1 // pred_fallthru
      _
    %v82 = vld [vmem:[#allocation2] sm:$0xf]
    %v83 = vld [vmem:[#allocation2 + $0x4] sm:$0xf]
    %v84 = vld [vmem:[#allocation4] sm:$0xf]
    %v85 = vld [vmem:[#allocation4 + $0x4] sm:$0xf]
    %v86 = vld [vmem:[%s2] sm:$0x1]
    %v88 = vlaneseq
    %v89 = vshrl.u32 %v88, 7
    %v90 = vsub.s32 0, %v89
    %v91 = vrot.slane %v86, %v90
    %v95 = vunpack.c.l.b16 %v82
    %v96 = vunpack.c.l.b16 %v83
    %v97 = vpack.c.b16 %v96, %v95
    %v100 = vunpack.c.l.b16 %v84
    %v101 = vunpack.c.l.b16 %v85
    %v102 = vpack.c.b16 %v101, %v100
    %vm104 = vcmask 130048
    %v106 = vsel %vm104, %v97, 0
    %108 = vmatprep.subr.bf16.mxu0 0
    %109 = vmatpush1.bf16.msra.mxu0 %v102
    %110 = vmatprep.subr.bf16.mxu0 0
    %111 = vmatpush1.bf16.msra.mxu0 0
    %112 = vmatprep.subr.bf16.mxu0 0
    %113 = vmatpush1.bf16.msra.mxu0 0
    %114 = vmatprep.subr.bf16.mxu0 0
    %115 = vmatpush1.bf16.msra.mxu0 0
    %116 = vmatprep.subr.bf16.mxu0 0
    %117 = vmatpush1.bf16.msra.mxu0 0
    %118 = vmatprep.subr.bf16.mxu0 0
    %119 = vmatpush1.bf16.msra.mxu0 0
    %120 = vmatprep.subr.bf16.mxu0 0
    %121 = vmatpush1.bf16.msra.mxu0 0
    %122 = vmatprep.subr.bf16.mxu0 0
    %123 = vmatpush1.bf16.msra.mxu0 0
    %124 = vmatprep.subr.bf16.mxu0 0
    %125 = vmatpush1.bf16.msra.mxu0 0
    %126 = vmatprep.subr.bf16.mxu0 0
    %127 = vmatpush1.bf16.msra.mxu0 0
    %128 = vmatprep.subr.bf16.mxu0 0
    %129 = vmatpush1.bf16.msra.mxu0 0
    %130 = vmatprep.subr.bf16.mxu0 0
    %131 = vmatpush1.bf16.msra.mxu0 0
    %132 = vmatprep.subr.bf16.mxu0 0
    %133 = vmatpush1.bf16.msra.mxu0 0
    %134 = vmatprep.subr.bf16.mxu0 0
    %135 = vmatpush1.bf16.msra.mxu0 0
    %136 = vmatprep.subr.bf16.mxu0 0
    %137 = vmatpush1.bf16.msra.mxu0 0
    %138 = vmatprep.subr.bf16.mxu0 0
    %139 = vmatpush1.bf16.msra.mxu0 0
    %140 = vmatprep.mubr.bf16.mxu0 0
    %141 = vmatmul.mubr.bf16.gmra.mrb[0].mxu0 %v106
    %v142 = vpop.f32.mrb[0].mxu0
    %v143 = vadd.f32 %v91, %v142
    %v144 = vpop.f32.mrb[0].mxu0
    %v145 = vpop.f32.mrb[0].mxu0
    %v146 = vadd.f32 %v91, %v145
    %v147 = vpop.f32.mrb[0].mxu0
    %148 = vdwg.mxu0
    %v149 = vmax.f32 %v143, 0.0
    %v150 = vmax.f32 %v146, 0.0
    %v151 = vpack.c.bf16 %v150, %v149
    %v152 = vld [vmem:[#allocation6] sm:$0xf]
    %v153 = vld [vmem:[#allocation6 + $0x4] sm:$0xf]
    %v154 = vld [vmem:[#allocation6 + $0x8] sm:$0xf]
    %v155 = vld [vmem:[#allocation6 + $0xc] sm:$0xf]
    %v156 = vld [vmem:[#allocation6 + $0x10] sm:$0xf]
    %v157 = vld [vmem:[#allocation6 + $0x14] sm:$0xf]
    %v158 = vld [vmem:[#allocation6 + $0x18] sm:$0xf]
    %v159 = vld [vmem:[#allocation6 + $0x1c] sm:$0xf]
    %v160 = vld [vmem:[#allocation6 + $0x20] sm:$0xf]
    %v161 = vld [vmem:[#allocation6 + $0x24] sm:$0xf]
    %v162 = vld [vmem:[#allocation6 + $0x28] sm:$0xf]
    %v163 = vld [vmem:[#allocation6 + $0x2c] sm:$0xf]
    %v164 = vld [vmem:[#allocation6 + $0x30] sm:$0xf]
    %v165 = vld [vmem:[#allocation6 + $0x34] sm:$0xf]
    %v166 = vld [vmem:[#allocation6 + $0x38] sm:$0xf]
    %v167 = vld [vmem:[#allocation6 + $0x3c] sm:$0xf]
    %v168 = vld [vmem:[%s4] sm:$0x1]
    %v170 = vlaneseq
    %v171 = vshrl.u32 %v170, 7
    %v172 = vsub.s32 0, %v171
    %v173 = vrot.slane %v168, %v172
    %v191 = vunpack.c.l.b16 %v152
    %v192 = vunpack.c.l.b16 %v153
    %v193 = vunpack.c.l.b16 %v154
    %v194 = vunpack.c.l.b16 %v155
    %v195 = vunpack.c.l.b16 %v156
    %v196 = vunpack.c.l.b16 %v157
    %v197 = vunpack.c.l.b16 %v158
    %v198 = vunpack.c.l.b16 %v159
    %v199 = vunpack.c.l.b16 %v160
    %v200 = vunpack.c.l.b16 %v161
    %v201 = vunpack.c.l.b16 %v162
    %v202 = vunpack.c.l.b16 %v163
    %v203 = vunpack.c.l.b16 %v164
    %v204 = vunpack.c.l.b16 %v165
    %v205 = vunpack.c.l.b16 %v166
    %v206 = vunpack.c.l.b16 %v167
    %v207 = vpack.c.b16 %v192, %v191
    %v208 = vpack.c.b16 %v194, %v193
    %v209 = vpack.c.b16 %v196, %v195
    %v210 = vpack.c.b16 %v198, %v197
    %v211 = vpack.c.b16 %v200, %v199
    %v212 = vpack.c.b16 %v202, %v201
    %v213 = vpack.c.b16 %v204, %v203
    %v214 = vpack.c.b16 %v206, %v205
    %223 = vmatprep.subr.bf16.mxu0 0
    %224 = vmatpush1.bf16.msra.mxu0 %v207
    %225 = vmatprep.subr.bf16.mxu0 0
    %226 = vmatpush1.bf16.msra.mxu0 %v208
    %227 = vmatprep.subr.bf16.mxu0 0
    %228 = vmatpush1.bf16.msra.mxu0 %v209
    %229 = vmatprep.subr.bf16.mxu0 0
    %230 = vmatpush1.bf16.msra.mxu0 %v210
    %231 = vmatprep.subr.bf16.mxu0 0
    %232 = vmatpush1.bf16.msra.mxu0 %v211
    %233 = vmatprep.subr.bf16.mxu0 0
    %234 = vmatpush1.bf16.msra.mxu0 %v212
    %235 = vmatprep.subr.bf16.mxu0 0
    %236 = vmatpush1.bf16.msra.mxu0 %v213
    %237 = vmatprep.subr.bf16.mxu0 0
    %238 = vmatpush1.bf16.msra.mxu0 %v214
    %239 = vmatprep.subr.bf16.mxu0 0
    %240 = vmatpush1.bf16.msra.mxu0 0
    %241 = vmatprep.subr.bf16.mxu0 0
    %242 = vmatpush1.bf16.msra.mxu0 0
    %243 = vmatprep.subr.bf16.mxu0 0
    %244 = vmatpush1.bf16.msra.mxu0 0
    %245 = vmatprep.subr.bf16.mxu0 0
    %246 = vmatpush1.bf16.msra.mxu0 0
    %247 = vmatprep.subr.bf16.mxu0 0
    %248 = vmatpush1.bf16.msra.mxu0 0
    %249 = vmatprep.subr.bf16.mxu0 0
    %250 = vmatpush1.bf16.msra.mxu0 0
    %251 = vmatprep.subr.bf16.mxu0 0
    %252 = vmatpush1.bf16.msra.mxu0 0
    %253 = vmatprep.subr.bf16.mxu0 0
    %254 = vmatpush1.bf16.msra.mxu0 0
    %255 = vmatprep.mubr.bf16.mxu0 0
    %256 = vmatmul.mubr.bf16.gmra.mrb[0].mxu0 %v151
    %v257 = vpop.f32.mrb[0].mxu0
    %v258 = vadd.f32 %v173, %v257
    %v259 = vpop.f32.mrb[0].mxu0
    %v260 = vpop.f32.mrb[0].mxu0
    %v261 = vadd.f32 %v173, %v260
    %v262 = vpop.f32.mrb[0].mxu0
    %263 = vdwg.mxu0
    %v264 = vmax.f32 %v258, 0.0
    %v265 = vmax.f32 %v261, 0.0
    %v266 = vpack.c.bf16 %v265, %v264
    %v267 = vld [vmem:[#allocation7] sm:$0xf]
    %v268 = vld [vmem:[#allocation7 + $0x4] sm:$0xf]
    %v269 = vld [vmem:[#allocation7 + $0x8] sm:$0xf]
    %v270 = vld [vmem:[#allocation7 + $0xc] sm:$0xf]
    %v271 = vld [vmem:[#allocation7 + $0x10] sm:$0xf]
    %v272 = vld [vmem:[#allocation7 + $0x14] sm:$0xf]
    %v273 = vld [vmem:[#allocation7 + $0x18] sm:$0xf]
    %v274 = vld [vmem:[#allocation7 + $0x1c] sm:$0xf]
    %v275 = vld [vmem:[#allocation7 + $0x20] sm:$0xf]
    %v276 = vld [vmem:[#allocation7 + $0x24] sm:$0xf]
    %v277 = vld [vmem:[#allocation7 + $0x28] sm:$0xf]
    %v278 = vld [vmem:[#allocation7 + $0x2c] sm:$0xf]
    %v279 = vld [vmem:[#allocation7 + $0x30] sm:$0xf]
    %v280 = vld [vmem:[#allocation7 + $0x34] sm:$0xf]
    %v281 = vld [vmem:[#allocation7 + $0x38] sm:$0xf]
    %v282 = vld [vmem:[#allocation7 + $0x3c] sm:$0xf]
    %v299 = vunpack.c.l.b16 %v267
    %v300 = vunpack.c.l.b16 %v268
    %v301 = vunpack.c.l.b16 %v269
    %v302 = vunpack.c.l.b16 %v270
    %v303 = vunpack.c.l.b16 %v271
    %v304 = vunpack.c.l.b16 %v272
    %v305 = vunpack.c.l.b16 %v273
    %v306 = vunpack.c.l.b16 %v274
    %v307 = vunpack.c.l.b16 %v275
    %v308 = vunpack.c.l.b16 %v276
    %v309 = vunpack.c.l.b16 %v277
    %v310 = vunpack.c.l.b16 %v278
    %v311 = vunpack.c.l.b16 %v279
    %v312 = vunpack.c.l.b16 %v280
    %v313 = vunpack.c.l.b16 %v281
    %v314 = vunpack.c.l.b16 %v282
    %v315 = vpack.c.b16 %v300, %v299
    %v316 = vpack.c.b16 %v302, %v301
    %v317 = vpack.c.b16 %v304, %v303
    %v318 = vpack.c.b16 %v306, %v305
    %v319 = vpack.c.b16 %v308, %v307
    %v320 = vpack.c.b16 %v310, %v309
    %v321 = vpack.c.b16 %v312, %v311
    %v322 = vpack.c.b16 %v314, %v313
    %331 = vmatprep.subr.bf16.mxu0 0
    %332 = vmatpush1.bf16.msra.mxu0 %v315
    %333 = vmatprep.subr.bf16.mxu0 0
    %334 = vmatpush1.bf16.msra.mxu0 %v316
    %335 = vmatprep.subr.bf16.mxu0 0
    %336 = vmatpush1.bf16.msra.mxu0 %v317
    %337 = vmatprep.subr.bf16.mxu0 0
    %338 = vmatpush1.bf16.msra.mxu0 %v318
    %339 = vmatprep.subr.bf16.mxu0 0
    %340 = vmatpush1.bf16.msra.mxu0 %v319
    %341 = vmatprep.subr.bf16.mxu0 0
    %342 = vmatpush1.bf16.msra.mxu0 %v320
    %343 = vmatprep.subr.bf16.mxu0 0
    %344 = vmatpush1.bf16.msra.mxu0 %v321
    %345 = vmatprep.subr.bf16.mxu0 0
    %346 = vmatpush1.bf16.msra.mxu0 %v322
    %347 = vmatprep.subr.bf16.mxu0 0
    %348 = vmatpush1.bf16.msra.mxu0 0
    %349 = vmatprep.subr.bf16.mxu0 0
    %350 = vmatpush1.bf16.msra.mxu0 0
    %351 = vmatprep.subr.bf16.mxu0 0
    %352 = vmatpush1.bf16.msra.mxu0 0
    %353 = vmatprep.subr.bf16.mxu0 0
    %354 = vmatpush1.bf16.msra.mxu0 0
    %355 = vmatprep.subr.bf16.mxu0 0
    %356 = vmatpush1.bf16.msra.mxu0 0
    %357 = vmatprep.subr.bf16.mxu0 0
    %358 = vmatpush1.bf16.msra.mxu0 0
    %359 = vmatprep.subr.bf16.mxu0 0
    %360 = vmatpush1.bf16.msra.mxu0 0
    %361 = vmatprep.subr.bf16.mxu0 0
    %362 = vmatpush1.bf16.msra.mxu0 0
    %363 = vmatprep.mubr.bf16.mxu0 0
    %364 = vmatmul.mubr.bf16.gmra.mrb[0].mxu0 %v266
    %v365 = vpop.f32.mrb[0].mxu0
    %v366 = vadd.f32 0.0, %v365
    %v367 = vpop.f32.mrb[0].mxu0
    %v368 = vpop.f32.mrb[0].mxu0
    %v369 = vadd.f32 0.0, %v368
    %v370 = vpop.f32.mrb[0].mxu0
    %371 = vdwg.mxu0
    %v372 = vld [vmem:[%s6] sm:$0x1]
    %v374 = vlaneseq
    %v375 = vshrl.u32 %v374, 7
    %v376 = vsub.s32 0, %v375
    %v377 = vrot.slane %v372, %v376
    %v379 = vadd.f32 %v366, %v377
    %v380 = vadd.f32 %v369, %v377
    %vm381 = vcmask 31744
    %382 = vst.msk [vmem:[%s7] sm:$0xff] %vm381, %v379
    %383 = vst.msk [vmem:[%s7 + $0x8] sm:$0xff] %vm381, %v380
    // Predicated region
    $region46: #{tpu_custom_call.1} parent=1 // pred_check
      _
    $region47: #{tpu_custom_call.1} parent=1 // pred_check_branch
      %385 = sbr.rel (0) target = $region49
    $region48: #{tpu_custom_call.1} parent=1 // pred_region
      _
    $region49: #{tpu_custom_call.1} parent=1 // pred_fallthru
      _
    // Predicated region
    $region50: #{tpu_custom_call.1} parent=1 // pred_check
      _
    $region51: #{tpu_custom_call.1} parent=1 // pred_check_branch
      %387 = sbr.rel (0) target = $region53
    $region52: #{tpu_custom_call.1} parent=1 // pred_region
      _
    $region53: #{tpu_custom_call.1} parent=1 // pred_fallthru
      _
    %388 = vsyncpa [#allocation3], 1
    %389 = vsyncpa [#allocation5], 1
    %390 = vsyncpa [#allocation8], 1

</llo_original>
